<compile_context>
chip_gen: v6e
topology: v6e:2x2x1
jax: 0.10.0
libtpu: 0.0.40
codegen_flags: <defaults>
</compile_context>

<pallas_src>
import functools

import jax
import jax.numpy as jnp
from jax.experimental import pallas as pl
from jax.experimental.pallas import tpu as pltpu


def _linear_svm_kernel(x_ref, w_ref, b_ref, o_ref, *, use_mxu):
    # x_ref: (TB, D) VMEM, native dtype.   w_ref: (1, D) VMEM, grid-resident.
    # b_ref: (1, 1) SMEM f32 scalar.       o_ref: (TB, 1) VMEM, x dtype.
    if use_mxu:
        # bf16/fp16 path: MXU matvec with f32 accumulation.  The contraction
        # is over dim 1 of both operands (x @ w.T), so no whole-tile f32
        # upcast temp is ever materialized.
        acc = jax.lax.dot_general(
            x_ref[...], w_ref[...],
            dimension_numbers=(((1,), (1,)), ((), ())),
            preferred_element_type=jnp.float32)          # (TB, 1) f32
    else:
        # f32 path: VPU broadcast-multiply + XLU lane reduce, f32 accumulation.
        acc = jnp.sum(x_ref[...] * w_ref[...], axis=-1, keepdims=True,
                      dtype=jnp.float32)                 # (TB, 1) f32
    o_ref[...] = (acc + b_ref[0, 0]).astype(o_ref.dtype)


def _vmem_config():
    """Returns (vmem_limit_bytes, block_budget_bytes) tuned per chip."""
    phys = 64 << 20                                    # conservative default (v7x)
    try:
        info = pltpu.get_tpu_info()
        phys = getattr(info, "vmem_capacity_bytes", phys) or phys
    except Exception:
        pass
    if phys >= (100 << 20):       # v5e / v6e: 128 MiB physical VMEM
        return 64 << 20, 44 << 20
    return 32 << 20, 20 << 20     # v7x: 64 MiB physical, 32 MiB scoped default


def _per_row_vmem_bytes(D, itemsize, use_mxu):
    """VMEM bytes per batch row that scale with the tile height."""
    x_bytes = 2 * D * itemsize          # double-buffered (tb, D) x block
    out_bytes = 2 * 128 * itemsize      # (tb, 1) out block is lane-padded to 128
    acc_bytes = 128 * 4                 # (tb, 1) f32 accumulator / MXU result
    tmp_bytes = 0 if use_mxu else D * 4 # possible (tb, D) f32 product temp (VPU path)
    return x_bytes + out_bytes + acc_bytes + tmp_bytes


def _pick_batch_tile(B, per_row_bytes, x_row_bytes, block_budget):
    # Byte-budgeted tile: as many rows as fit the block budget, rounded down
    # to a sublane-friendly multiple of 128.  No fixed row cap.
    tb = block_budget // max(1, per_row_bytes)
    tb = max(128, (tb // 128) * 128)

    # Force >= 2 (prefer 4) grid steps for non-trivial batches so the
    # "parallel" axis can shard across v7x's two TensorCores and the x DMA is
    # pipelined against compute on every chip.
    x_bytes = B * x_row_bytes
    if B >= 1024 and x_bytes >= (8 << 20):
        steps = 4
    elif B >= 256 and x_bytes >= (1 << 20):
        steps = 2
    else:
        steps = 1
    if steps > 1:
        tb = min(tb, max(128, (B // steps // 128) * 128))

    return B if tb >= B else tb


def linear_svm_forward(x, weight, bias):
    """x: (B, D); weight: (1, D) (PyTorch nn.Linear layout); bias: (1,).

    Returns self.linear(x).squeeze(): (B,) for B > 1, 0-d scalar for B == 1.
    """
    B, D = x.shape
    itemsize = x.dtype.itemsize
    # bf16/fp16: use the (otherwise idle) MXU — avoids a full-tile f32 upcast
    # (v7x VMEM) and the missing-bf16-VPU penalty on v5e.  f32 stays on the VPU.
    use_mxu = x.dtype != jnp.float32

    vmem_limit, block_budget = _vmem_config()
    per_row = _per_row_vmem_bytes(D, itemsize, use_mxu)
    tb = _pick_batch_tile(B, per_row, D * itemsize, block_budget)
    grid = (pl.cdiv(B, tb),)

    w_row = weight.reshape(1, D).astype(x.dtype)     # grid-resident, VMEM-cheap row
    b = bias.reshape(1, 1).astype(jnp.float32)       # SMEM scalar

    cost = pl.CostEstimate(
        flops=2 * B * D,
        transcendentals=0,
        bytes_accessed=(B * D * itemsize             # x streamed
                        + D * itemsize               # weight
                        + B * itemsize + 4),         # output + bias
    )

    kernel = functools.partial(_linear_svm_kernel, use_mxu=use_mxu)

    out = pl.pallas_call(
        kernel,
        out_shape=jax.ShapeDtypeStruct((B, 1), x.dtype),
        grid_spec=pltpu.PrefetchScalarGridSpec(
            num_scalar_prefetch=0,
            grid=grid,
            in_specs=[
                pl.BlockSpec((tb, D), lambda i: (i, 0)),       # streamed x tile
                pl.BlockSpec((1, D), lambda i: (0, 0)),        # resident weight
                pl.BlockSpec((1, 1), lambda i: (0, 0),
                             memory_space=pltpu.SMEM),         # resident bias
            ],
            out_specs=pl.BlockSpec((tb, 1), lambda i: (i, 0)),
        ),
        compiler_params=pltpu.CompilerParams(
            dimension_semantics=("parallel",),                 # megacore on v7x
            vmem_limit_bytes=vmem_limit,
        ),
        cost_estimate=cost,
    )(x, w_row, b)

    # TODO(synk): for very small D (<~256) a lane-dense (1, B) output layout
    # would replace the 1-lane (tb, 1) stores; and for very large D (tens of
    # thousands+) add a K (reduction) grid axis with an f32 VMEM accumulator.
    # .squeeze() matches torch's .squeeze(): drops the size-1 feature dim, and
    # a B == 1 input collapses to a 0-d scalar exactly like PyTorch.
    return jnp.squeeze(out)


if __name__ == "__main__":
    key = jax.random.PRNGKey(0)
    batch, input_dim = 8, 32

    kx, kw = jax.random.split(key)
    x = jax.random.normal(kx, (batch, input_dim), dtype=jnp.float32)

    # nn.Linear init: weight ~ U(-1/sqrt(D), 1/sqrt(D)); bias zeroed (as in module).
    bound = 1.0 / jnp.sqrt(jnp.float32(input_dim))
    weight = jax.random.uniform(kw, (1, input_dim), dtype=jnp.float32,
                                minval=-bound, maxval=bound)
    bias = jnp.zeros((1,), dtype=jnp.float32)

    y = linear_svm_forward(x, weight, bias)
    jax.block_until_ready(y)

    # Sanity check against a plain-JAX reference.
    y_ref = jnp.squeeze(x @ weight.T + bias)
    assert y.shape == (batch,)
    assert jnp.allclose(y, y_ref, atol=1e-5, rtol=1e-5)

    print("KERNEL_OK")
</pallas_src>

<mosaic_0001>
module attributes {stable_mosaic.version = 11 : i64} {
  func.func @_linear_svm_kernel(%arg0: i32, %arg1: memref<8x32xf32, #tpu.memory_space<vmem>>, %arg2: memref<1x32xf32, #tpu.memory_space<vmem>>, %arg3: memref<1x1xf32, #tpu.memory_space<smem>>, %arg4: memref<8x1xf32, #tpu.memory_space<vmem>>) attributes {dimension_semantics = [#tpu.dimension_semantics<parallel>], iteration_bounds = array<i64: 1>, scalar_prefetch = 0 : i64, scratch_operands = 0 : i64, tpu.core_type = #tpu.core_type<tc>, window_params = [{transform_indices = @transform_0, window_bounds = array<i64: 8, 32>}, {pipeline_mode = #tpu.pipeline_mode<synchronous>, transform_indices = @transform_1, window_bounds = array<i64: 1, 32>}, {transform_indices = @transform_2, window_bounds = array<i64: 1, 1>}, {transform_indices = @transform_3, window_bounds = array<i64: 8, 1>}]} {
    %c0 = arith.constant 0 : index
    %c0_0 = arith.constant 0 : index
    %0 = vector.load %arg1[%c0, %c0_0] : memref<8x32xf32, #tpu.memory_space<vmem>>, vector<8x32xf32>
    %c0_1 = arith.constant 0 : index
    %c0_2 = arith.constant 0 : index
    %1 = vector.load %arg2[%c0_1, %c0_2] : memref<1x32xf32, #tpu.memory_space<vmem>>, vector<1x32xf32>
    %2 = vector.broadcast %1 : vector<1x32xf32> to vector<8x32xf32>
    %3 = arith.mulf %0, %2 : vector<8x32xf32>
    %cst = arith.constant dense<0.000000e+00> : vector<8xf32>
    %4 = vector.multi_reduction <add>, %3, %cst [1] : vector<8x32xf32> to vector<8xf32>
    %5 = vector.shape_cast %4 : vector<8xf32> to vector<8x1xf32>
    %c0_3 = arith.constant 0 : index
    %c0_4 = arith.constant 0 : index
    %6 = memref.load %arg3[%c0_3, %c0_4] : memref<1x1xf32, #tpu.memory_space<smem>>
    %7 = vector.broadcast %6 : f32 to vector<8x1xf32>
    %8 = arith.addf %5, %7 : vector<8x1xf32>
    %c0_5 = arith.constant 0 : index
    %c0_6 = arith.constant 0 : index
    %9 = vector.load %arg4[%c0_5, %c0_6] : memref<8x1xf32, #tpu.memory_space<vmem>>, vector<8x1xf32>
    tpu.vector_store %arg4[%c0_5, %c0_6], %8 {strides = array<i32>} : memref<8x1xf32, #tpu.memory_space<vmem>>, vector<8x1xf32>,
    return
  }
  func.func @transform_0(%arg0: i32) -> (i32, i32) {
    %c0_i32 = arith.constant 0 : i32
    %c0_i32_0 = arith.constant 0 : i32
    return %arg0, %c0_i32 : i32, i32
  }
  func.func @transform_1(%arg0: i32) -> (i32, i32) {
    %c0_i32 = arith.constant 0 : i32
    %c0_i32_0 = arith.constant 0 : i32
    %c0_i32_1 = arith.constant 0 : i32
    return %c0_i32, %c0_i32_0 : i32, i32
  }
  func.func @transform_2(%arg0: i32) -> (i32, i32) {
    %c0_i32 = arith.constant 0 : i32
    %c0_i32_0 = arith.constant 0 : i32
    %c0_i32_1 = arith.constant 0 : i32
    return %c0_i32, %c0_i32_0 : i32, i32
  }
  func.func @transform_3(%arg0: i32) -> (i32, i32) {
    %c0_i32 = arith.constant 0 : i32
    %c0_i32_0 = arith.constant 0 : i32
    return %arg0, %c0_i32 : i32, i32
  }
}

</mosaic_0001>

<llo_original>
// kernel: tpu_custom_call.1
$region0: #{tpu_custom_call.1}
  #allocation0 [shape = 'u32[]', space=smem, size = 0x4, offset = 0x4, fixed_abs, tag = 'smem constant byte address 0x4 - core index']
  #allocation1 [shape = 'u32[144,128]{1,0:T(1,128)}', space=vmem, size = 0x12000, scoped, tag = 'internal scratch']
  #allocation2 [shape = 'f32[1,1]{1,0:T(1,128)S(6)}', space=smem, size = 0x200, scoped, tag = 'scoped memory for tpu_custom_call.1']
  %s0 = inlined_call_operand.hbm [shape: f32[8,32], index: 0, kind: input, shape index: {}]
  %s1 = inlined_call_operand.vmem [shape: f32[1,32], index: 1, kind: input, shape index: {}]
  %s2 = inlined_call_operand.<no memory space> [shape: f32[1,1], index: 2, kind: input, shape index: {}]
  %s3 = inlined_call_operand.vmem [shape: f32[8,1], index: 3, kind: output, shape index: {}]
  %s4 = sld [smem:[#allocation0]]
  $region26: #{tpu_custom_call.1} parent=0
    _
  %s6 = ssub.s32 1, %s4
  %s7 = scalar_select 0, %s6, %s4
  %8 = sst [smem:[#allocation2]] %s2
  $region1: #{tpu_custom_call.1} parent=0
    #allocation3 [shape = 'u8[4096]{0}', space=vmem, size = 0x1000, scoped, tag = 'input window, operand 0, single buffered']
    #allocation4 [shape = 's32[1]{0}', space=sflag, size = 0x4, scoped, tag = 'scoped memory for tpu_custom_call.1']
    %9 = vsyncpa [#allocation4], 0
    // Predicated region
    $region2: #{tpu_custom_call.1} parent=1 // pred_check
      _
    $region3: #{tpu_custom_call.1} parent=1 // pred_check_branch
      %11 = sbr.rel (0) target = $region5
    $region4: #{tpu_custom_call.1} parent=1 // pred_region
      %s13 = ssub.s32 128, 128
      %14 = vsyncadd [#allocation4], %s13
      %s16 = sshll.u32 [#allocation3], 4
      %s17 = int_to_ptr.vmem [resolvable:$true] %s16
      %19 = dma.hbm_to_vmem [thread:$0]  %s0, 128, %s17, [#allocation4]
    $region5: #{tpu_custom_call.1} parent=1 // pred_fallthru
      _
    // Predicated region
    $region6: #{tpu_custom_call.1} parent=1 // pred_check
      _
    $region7: #{tpu_custom_call.1} parent=1 // pred_check_branch
      %21 = sbr.rel (0) target = $region9
    $region8: #{tpu_custom_call.1} parent=1 // pred_region
      _
    $region9: #{tpu_custom_call.1} parent=1 // pred_fallthru
      _
    // Predicated region
    $region10: #{tpu_custom_call.1} parent=1 // pred_check
      _
    $region11: #{tpu_custom_call.1} parent=1 // pred_check_branch
      %23 = sbr.rel (0) target = $region13
    $region12: #{tpu_custom_call.1} parent=1 // pred_region
      _
    $region13: #{tpu_custom_call.1} parent=1 // pred_fallthru
      _
    // Predicated region
    $region14: #{tpu_custom_call.1} parent=1 // pred_check
      _
    $region15: #{tpu_custom_call.1} parent=1 // pred_check_branch
      %25 = sbr.rel (0) target = $region17
    $region16: #{tpu_custom_call.1} parent=1 // pred_region
      %26 = dma.done [#allocation4], 128
    $region17: #{tpu_custom_call.1} parent=1 // pred_fallthru
      _
    %v27 = vld [vmem:[#allocation3] sm:$0xff]
    %v28 = vld [vmem:[%s1] sm:$0x1]
    %v30 = vlaneseq
    %v31 = vshrl.u32 %v30, 7
    %v32 = vsub.s32 0, %v31
    %v33 = vrot.slane %v28, %v32
    %v35 = vmul.f32 %v27, %v33
    %vm36 = vcmask 261120
    %v37 = vsel %vm36, %v35, 0.0
    %38 = vadd.xlane.f32.xlu0 %v37
    %v39 = vpop.xlane.xlu0 %38
    %s40 = sld [smem:[#allocation2]]
    %v41 = vstv %s40
    %v42 = vadd.f32 %v39, %v41
    %vm43 = vcmask 7168
    %44 = vst.msk [vmem:[%s3] sm:$0xff] %vm43, %v42
    // Predicated region
    $region18: #{tpu_custom_call.1} parent=1 // pred_check
      _
    $region19: #{tpu_custom_call.1} parent=1 // pred_check_branch
      %46 = sbr.rel (0) target = $region21
    $region20: #{tpu_custom_call.1} parent=1 // pred_region
      _
    $region21: #{tpu_custom_call.1} parent=1 // pred_fallthru
      _
    // Predicated region
    $region22: #{tpu_custom_call.1} parent=1 // pred_check
      _
    $region23: #{tpu_custom_call.1} parent=1 // pred_check_branch
      %48 = sbr.rel (0) target = $region25
    $region24: #{tpu_custom_call.1} parent=1 // pred_region
      _
    $region25: #{tpu_custom_call.1} parent=1 // pred_fallthru
      _
    %49 = vsyncpa [#allocation4], 1

</llo_original>
